<compile_context>
chip_gen: v6e
topology: v6e:2x2x1
jax: 0.10.0
libtpu: 0.0.40
codegen_flags: <defaults>
</compile_context>

<pallas_src>
import jax
import jax.numpy as jnp
from jax.experimental import pallas as pl
from jax.experimental.pallas import tpu as pltpu


def eslm_forward(input_ids, attention_mask, params, *, seq_tile=16):
    """Full ESLM forward ('standard' mode). Encoder stand-in in plain JAX, head in Pallas."""
    # --- synthetic "lm_encoder": bf16 embedding lookup, padded positions zeroed.
    # (gather + mask fuse into a single XLA producer; the kernel streams its output)
    emb = params["emb_table"][input_ids]                          # (B, S, D) bf16
    enc = emb * attention_mask[..., None].astype(emb.dtype)       # (B, S, D) bf16

    B, S, D = enc.shape
    H = params["w1"].shape[1]
    St = min(seq_tile, S)
    assert S % St == 0, "seq_tile must divide S"
    inv_s = 1.0 / float(S)   # .mean(dim=1) divides by full S (incl. padded positions)

    def kernel(enc_ref, w1_ref, b1_ref, w2_ref, b2_ref, w3t_ref, b3_ref,
               out_ref, pooled_acc):
        k = pl.program_id(0)

        @pl.when(k == 0)
        def _():
            pooled_acc[...] = jnp.zeros_like(pooled_acc)

        # pooled_output = encoder_output.mean(dim=1): accumulate the S-sum in f32.
        pooled_acc[...] += jnp.sum(enc_ref[...].astype(jnp.float32), axis=1)

        @pl.when(k == pl.num_programs(0) - 1)
        def _():
            pooled = pooled_acc[...] * inv_s                       # (B, D)

            # attn_weights = softmax(Linear(D,1)(pooled), dim=-1) over a size-1 axis
            # == 1.0 exactly, so combined_output == pooled_output (layer elided).
            x = pooled.astype(jnp.bfloat16)

            # regression_output = MLP(combined): bf16 MXU matmuls, f32 accumulation.
            h1 = jnp.maximum(
                jnp.dot(x, w1_ref[...], preferred_element_type=jnp.float32)
                + b1_ref[...], 0.0)                                # (B, H)
            h2 = jnp.maximum(
                jnp.dot(h1.astype(jnp.bfloat16), w2_ref[...],
                        preferred_element_type=jnp.float32)
                + b2_ref[...], 0.0)                                # (B, H)

            # Linear(H, 1): VPU multiply + lane reduce (no 1-wide MXU matmul).
            reg = jnp.sum(h2 * w3t_ref[...], axis=-1, keepdims=True) + b3_ref[0, 0]

            # softmax over the batch dim (axis 0); whole batch lives in this block.
            r_max = jnp.max(reg, axis=0, keepdims=True)
            r_exp = jnp.exp(reg - r_max)
            out_ref[...] = r_exp / jnp.sum(r_exp, axis=0, keepdims=True)

    grid_spec = pltpu.PrefetchScalarGridSpec(
        num_scalar_prefetch=0,
        grid=(S // St,),
        in_specs=[
            pl.BlockSpec((B, St, D), lambda k: (0, k, 0)),     # streamed encoder tiles
            pl.BlockSpec((D, H), lambda k: (0, 0)),            # w1 (resident)
            pl.BlockSpec((1, H), lambda k: (0, 0)),            # b1
            pl.BlockSpec((H, H), lambda k: (0, 0)),            # w2 (resident)
            pl.BlockSpec((1, H), lambda k: (0, 0)),            # b2
            pl.BlockSpec((1, H), lambda k: (0, 0)),            # w3 row (for lane reduce)
            pl.BlockSpec(memory_space=pltpu.MemorySpace.SMEM), # b3 scalar
        ],
        out_specs=pl.BlockSpec((B, 1), lambda k: (0, 0)),
        scratch_shapes=[pltpu.VMEM((B, D), jnp.float32)],      # pooled-sum accumulator
    )

    # Single reduction axis over S. B is intentionally NOT tiled / parallelized:
    # the final softmax normalizes over the whole batch. For large B, tile B with a
    # "parallel" axis and a two-pass (max/sum, then normalize) softmax instead.
    return pl.pallas_call(
        kernel,
        out_shape=jax.ShapeDtypeStruct((B, 1), jnp.float32),
        grid_spec=grid_spec,
        compiler_params=pltpu.CompilerParams(
            dimension_semantics=("arbitrary",)),
    )(enc, params["w1"], params["b1"], params["w2"], params["b2"],
      params["w3t"], params["b3"])


def eslm_reference(input_ids, attention_mask, params):
    """Pure-JAX reference with identical math (for correctness check)."""
    emb = params["emb_table"][input_ids]
    enc = emb * attention_mask[..., None].astype(emb.dtype)
    pooled = jnp.mean(enc.astype(jnp.float32), axis=1)
    combined = pooled                      # softmax over size-1 attention output == 1
    h1 = jnp.maximum(
        jnp.dot(combined.astype(jnp.bfloat16), params["w1"],
                preferred_element_type=jnp.float32) + params["b1"], 0.0)
    h2 = jnp.maximum(
        jnp.dot(h1.astype(jnp.bfloat16), params["w2"],
                preferred_element_type=jnp.float32) + params["b2"], 0.0)
    reg = jnp.sum(h2 * params["w3t"], axis=-1, keepdims=True) + params["b3"][0, 0]
    return jax.nn.softmax(reg, axis=0)


def init_params(key, vocab_size, feat_dim, mlp_hidden_dim):
    ks = jax.random.split(key, 9)
    s = 0.05
    return {
        # stand-in encoder: bf16 activations halve the dominant HBM stream
        "emb_table": (jax.random.normal(ks[0], (vocab_size, feat_dim), jnp.float32) * s
                      ).astype(jnp.bfloat16),
        # attention Linear(feat_dim, 1): mathematically the identity after the size-1
        # softmax (attn_weights == 1.0); kept for spec parity, unused by the kernel.
        "wa": jax.random.normal(ks[1], (feat_dim, 1), jnp.float32) * s,
        "ba": jax.random.normal(ks[2], (1, 1), jnp.float32) * s,
        # mlp: Linear(D,H) -> ReLU -> Linear(H,H) -> ReLU -> Linear(H,1)
        "w1": (jax.random.normal(ks[3], (feat_dim, mlp_hidden_dim), jnp.float32) * s
               ).astype(jnp.bfloat16),
        "b1": jax.random.normal(ks[4], (1, mlp_hidden_dim), jnp.float32) * s,
        "w2": (jax.random.normal(ks[5], (mlp_hidden_dim, mlp_hidden_dim), jnp.float32) * s
               ).astype(jnp.bfloat16),
        "b2": jax.random.normal(ks[6], (1, mlp_hidden_dim), jnp.float32) * s,
        # final Linear(H, 1) stored as a (1, H) row for the VPU multiply + lane reduce
        "w3t": jax.random.normal(ks[7], (1, mlp_hidden_dim), jnp.float32) * s,
        "b3": jax.random.normal(ks[8], (1, 1), jnp.float32) * s,
    }


if __name__ == "__main__":
    # batch, seq, feat_dim, mlp_hidden, vocab (lane-dense D/H = 128)
    B, S, D, H, V = 8, 32, 128, 128, 128

    key = jax.random.PRNGKey(0)
    k_par, k_ids = jax.random.split(key)
    params = init_params(k_par, V, D, H)

    input_ids = jax.random.randint(k_ids, (B, S), 0, V, dtype=jnp.int32)
    attention_mask = jnp.concatenate(
        [jnp.ones((B, S - 8), jnp.int32), jnp.zeros((B, 8), jnp.int32)], axis=1)

    out = eslm_forward(input_ids, attention_mask, params)
    out = jax.block_until_ready(out)
    ref = eslm_reference(input_ids, attention_mask, params)

    assert out.shape == (B, 1)
    # softmax over dim=0 => column sums to 1
    assert jnp.allclose(jnp.sum(out, axis=0), 1.0, atol=1e-5)
    assert jnp.allclose(out, ref, atol=1e-4, rtol=1e-4)
    print("KERNEL_OK")
</pallas_src>

<mosaic_0001>
module attributes {stable_mosaic.version = 11 : i64} {
  func.func @kernel(%arg0: i32, %arg1: memref<8x16x128xbf16, #tpu.memory_space<vmem>>, %arg2: memref<128x128xbf16, #tpu.memory_space<vmem>>, %arg3: memref<1x128xf32, #tpu.memory_space<vmem>>, %arg4: memref<128x128xbf16, #tpu.memory_space<vmem>>, %arg5: memref<1x128xf32, #tpu.memory_space<vmem>>, %arg6: memref<1x128xf32, #tpu.memory_space<vmem>>, %arg7: memref<1x1xf32, #tpu.memory_space<smem>>, %arg8: memref<8x1xf32, #tpu.memory_space<vmem>>, %arg9: memref<8x128xf32, #tpu.memory_space<vmem>>) attributes {dimension_semantics = [#tpu.dimension_semantics<arbitrary>], iteration_bounds = array<i64: 2>, scalar_prefetch = 0 : i64, scratch_operands = 1 : i64, tpu.core_type = #tpu.core_type<tc>, window_params = [{transform_indices = @transform_0, window_bounds = array<i64: 8, 16, 128>}, {pipeline_mode = #tpu.pipeline_mode<synchronous>, transform_indices = @transform_1, window_bounds = array<i64: 128, 128>}, {pipeline_mode = #tpu.pipeline_mode<synchronous>, transform_indices = @transform_2, window_bounds = array<i64: 1, 128>}, {pipeline_mode = #tpu.pipeline_mode<synchronous>, transform_indices = @transform_3, window_bounds = array<i64: 128, 128>}, {pipeline_mode = #tpu.pipeline_mode<synchronous>, transform_indices = @transform_4, window_bounds = array<i64: 1, 128>}, {pipeline_mode = #tpu.pipeline_mode<synchronous>, transform_indices = @transform_5, window_bounds = array<i64: 1, 128>}, {transform_indices = @transform_6, window_bounds = array<i64: 1, 1>}, {pipeline_mode = #tpu.pipeline_mode<synchronous>, transform_indices = @transform_7, window_bounds = array<i64: 8, 1>}]} {
    %c0_i32 = arith.constant 0 : i32
    %0 = arith.cmpi eq, %arg0, %c0_i32 : i32
    %1 = arith.extui %0 : i1 to i32
    %c0_i32_0 = arith.constant 0 : i32
    %2 = arith.cmpi ne, %1, %c0_i32_0 : i32
    scf.if %2 {
      %cst_8 = arith.constant 0.000000e+00 : f32
      %12 = vector.broadcast %cst_8 : f32 to vector<8x128xf32>
      %c0_9 = arith.constant 0 : index
      %c0_10 = arith.constant 0 : index
      %13 = vector.load %arg9[%c0_9, %c0_10] : memref<8x128xf32, #tpu.memory_space<vmem>>, vector<8x128xf32>
      tpu.vector_store %arg9[%c0_9, %c0_10], %12 {strides = array<i32>} : memref<8x128xf32, #tpu.memory_space<vmem>>, vector<8x128xf32>,
    } else {
    }
    %c0 = arith.constant 0 : index
    %c0_1 = arith.constant 0 : index
    %3 = vector.load %arg9[%c0, %c0_1] : memref<8x128xf32, #tpu.memory_space<vmem>>, vector<8x128xf32>
    %c0_2 = arith.constant 0 : index
    %c0_3 = arith.constant 0 : index
    %c0_4 = arith.constant 0 : index
    %4 = vector.load %arg1[%c0_2, %c0_3, %c0_4] : memref<8x16x128xbf16, #tpu.memory_space<vmem>>, vector<8x16x128xbf16>
    %5 = arith.extf %4 : vector<8x16x128xbf16> to vector<8x16x128xf32>
    %cst = arith.constant dense<0.000000e+00> : vector<8x128xf32>
    %6 = vector.multi_reduction <add>, %5, %cst [1] : vector<8x16x128xf32> to vector<8x128xf32>
    %7 = arith.addf %3, %6 : vector<8x128xf32>
    %c0_5 = arith.constant 0 : index
    %c0_6 = arith.constant 0 : index
    %8 = vector.load %arg9[%c0_5, %c0_6] : memref<8x128xf32, #tpu.memory_space<vmem>>, vector<8x128xf32>
    tpu.vector_store %arg9[%c0_5, %c0_6], %7 {strides = array<i32>} : memref<8x128xf32, #tpu.memory_space<vmem>>, vector<8x128xf32>,
    %c1_i32 = arith.constant 1 : i32
    %9 = arith.cmpi eq, %arg0, %c1_i32 : i32
    %10 = arith.extui %9 : i1 to i32
    %c0_i32_7 = arith.constant 0 : i32
    %11 = arith.cmpi ne, %10, %c0_i32_7 : i32
    scf.if %11 {
      %c0_8 = arith.constant 0 : index
      %c0_9 = arith.constant 0 : index
      %12 = vector.load %arg9[%c0_8, %c0_9] : memref<8x128xf32, #tpu.memory_space<vmem>>, vector<8x128xf32>
      %cst_10 = arith.constant 3.125000e-02 : f32
      %13 = vector.broadcast %cst_10 : f32 to vector<8x128xf32>
      %14 = arith.mulf %12, %13 : vector<8x128xf32>
      %15 = arith.truncf %14 : vector<8x128xf32> to vector<8x128xbf16>
      %c0_11 = arith.constant 0 : index
      %c0_12 = arith.constant 0 : index
      %16 = vector.load %arg2[%c0_11, %c0_12] : memref<128x128xbf16, #tpu.memory_space<vmem>>, vector<128x128xbf16>
      %cst_13 = arith.constant dense<0.000000e+00> : vector<8x128xf32>
      %17 = tpu.matmul %15, %16, %cst_13 {dimension_numbers = #tpu.dot_dimension_numbers<[1], [0], [0], [1], [0, 0, 1, 1], [], []>} : vector<8x128xbf16>, vector<128x128xbf16>, vector<8x128xf32> -> vector<8x128xf32>
      %c0_14 = arith.constant 0 : index
      %c0_15 = arith.constant 0 : index
      %18 = vector.load %arg3[%c0_14, %c0_15] : memref<1x128xf32, #tpu.memory_space<vmem>>, vector<1x128xf32>
      %19 = vector.broadcast %18 : vector<1x128xf32> to vector<8x128xf32>
      %20 = arith.addf %17, %19 : vector<8x128xf32>
      %cst_16 = arith.constant 0.000000e+00 : f32
      %21 = vector.broadcast %cst_16 : f32 to vector<8x128xf32>
      %22 = arith.maximumf %20, %21 : vector<8x128xf32>
      %23 = arith.truncf %22 : vector<8x128xf32> to vector<8x128xbf16>
      %c0_17 = arith.constant 0 : index
      %c0_18 = arith.constant 0 : index
      %24 = vector.load %arg4[%c0_17, %c0_18] : memref<128x128xbf16, #tpu.memory_space<vmem>>, vector<128x128xbf16>
      %cst_19 = arith.constant dense<0.000000e+00> : vector<8x128xf32>
      %25 = tpu.matmul %23, %24, %cst_19 {dimension_numbers = #tpu.dot_dimension_numbers<[1], [0], [0], [1], [0, 0, 1, 1], [], []>} : vector<8x128xbf16>, vector<128x128xbf16>, vector<8x128xf32> -> vector<8x128xf32>
      %c0_20 = arith.constant 0 : index
      %c0_21 = arith.constant 0 : index
      %26 = vector.load %arg5[%c0_20, %c0_21] : memref<1x128xf32, #tpu.memory_space<vmem>>, vector<1x128xf32>
      %27 = vector.broadcast %26 : vector<1x128xf32> to vector<8x128xf32>
      %28 = arith.addf %25, %27 : vector<8x128xf32>
      %cst_22 = arith.constant 0.000000e+00 : f32
      %29 = vector.broadcast %cst_22 : f32 to vector<8x128xf32>
      %30 = arith.maximumf %28, %29 : vector<8x128xf32>
      %c0_23 = arith.constant 0 : index
      %c0_24 = arith.constant 0 : index
      %31 = vector.load %arg6[%c0_23, %c0_24] : memref<1x128xf32, #tpu.memory_space<vmem>>, vector<1x128xf32>
      %32 = vector.broadcast %31 : vector<1x128xf32> to vector<8x128xf32>
      %33 = arith.mulf %30, %32 : vector<8x128xf32>
      %cst_25 = arith.constant dense<0.000000e+00> : vector<8xf32>
      %34 = vector.multi_reduction <add>, %33, %cst_25 [1] : vector<8x128xf32> to vector<8xf32>
      %35 = vector.shape_cast %34 : vector<8xf32> to vector<8x1xf32>
      %c0_26 = arith.constant 0 : index
      %c0_27 = arith.constant 0 : index
      %36 = memref.load %arg7[%c0_26, %c0_27] : memref<1x1xf32, #tpu.memory_space<smem>>
      %37 = vector.broadcast %36 : f32 to vector<8x1xf32>
      %38 = arith.addf %35, %37 : vector<8x1xf32>
      %cst_28 = arith.constant dense<0xFF800000> : vector<1xf32>
      %39 = vector.multi_reduction <maximumf>, %38, %cst_28 [0] : vector<8x1xf32> to vector<1xf32>
      %40 = vector.shape_cast %39 : vector<1xf32> to vector<1x1xf32>
      %41 = vector.broadcast %40 : vector<1x1xf32> to vector<8x1xf32>
      %42 = arith.subf %38, %41 : vector<8x1xf32>
      %43 = math.exp %42 : vector<8x1xf32>
      %cst_29 = arith.constant dense<0.000000e+00> : vector<1xf32>
      %44 = vector.multi_reduction <add>, %43, %cst_29 [0] : vector<8x1xf32> to vector<1xf32>
      %45 = vector.shape_cast %44 : vector<1xf32> to vector<1x1xf32>
      %46 = vector.broadcast %45 : vector<1x1xf32> to vector<8x1xf32>
      %47 = arith.divf %43, %46 : vector<8x1xf32>
      %c0_30 = arith.constant 0 : index
      %c0_31 = arith.constant 0 : index
      %48 = vector.load %arg8[%c0_30, %c0_31] : memref<8x1xf32, #tpu.memory_space<vmem>>, vector<8x1xf32>
      tpu.vector_store %arg8[%c0_30, %c0_31], %47 {strides = array<i32>} : memref<8x1xf32, #tpu.memory_space<vmem>>, vector<8x1xf32>,
    } else {
    }
    return
  }
  func.func @transform_0(%arg0: i32) -> (i32, i32, i32) {
    %c0_i32 = arith.constant 0 : i32
    %c0_i32_0 = arith.constant 0 : i32
    %c0_i32_1 = arith.constant 0 : i32
    return %c0_i32, %arg0, %c0_i32_0 : i32, i32, i32
  }
  func.func @transform_1(%arg0: i32) -> (i32, i32) {
    %c0_i32 = arith.constant 0 : i32
    %c0_i32_0 = arith.constant 0 : i32
    %c0_i32_1 = arith.constant 0 : i32
    return %c0_i32, %c0_i32_0 : i32, i32
  }
  func.func @transform_2(%arg0: i32) -> (i32, i32) {
    %c0_i32 = arith.constant 0 : i32
    %c0_i32_0 = arith.constant 0 : i32
    %c0_i32_1 = arith.constant 0 : i32
    return %c0_i32, %c0_i32_0 : i32, i32
  }
  func.func @transform_3(%arg0: i32) -> (i32, i32) {
    %c0_i32 = arith.constant 0 : i32
    %c0_i32_0 = arith.constant 0 : i32
    %c0_i32_1 = arith.constant 0 : i32
    return %c0_i32, %c0_i32_0 : i32, i32
  }
  func.func @transform_4(%arg0: i32) -> (i32, i32) {
    %c0_i32 = arith.constant 0 : i32
    %c0_i32_0 = arith.constant 0 : i32
    %c0_i32_1 = arith.constant 0 : i32
    return %c0_i32, %c0_i32_0 : i32, i32
  }
  func.func @transform_5(%arg0: i32) -> (i32, i32) {
    %c0_i32 = arith.constant 0 : i32
    %c0_i32_0 = arith.constant 0 : i32
    %c0_i32_1 = arith.constant 0 : i32
    return %c0_i32, %c0_i32_0 : i32, i32
  }
  func.func @transform_6(%arg0: i32) -> (i32, i32) {
    %c0_i32 = arith.constant 0 : i32
    %c0_i32_0 = arith.constant 0 : i32
    %c0_i32_1 = arith.constant 0 : i32
    return %c0_i32, %c0_i32_0 : i32, i32
  }
  func.func @transform_7(%arg0: i32) -> (i32, i32) {
    %c0_i32 = arith.constant 0 : i32
    %c0_i32_0 = arith.constant 0 : i32
    %c0_i32_1 = arith.constant 0 : i32
    return %c0_i32, %c0_i32_0 : i32, i32
  }
}

</mosaic_0001>

<llo_original>
// kernel: tpu_custom_call.1
$region0: #{tpu_custom_call.1}
  #allocation0 [shape = 'u32[]', space=smem, size = 0x4, offset = 0x4, fixed_abs, tag = 'smem constant byte address 0x4 - core index']
  #allocation1 [shape = 'u32[144,128]{1,0:T(1,128)}', space=vmem, size = 0x12000, scoped, tag = 'internal scratch']
  #allocation2 [shape = 'f32[8,128]{1,0:T(8,128)}', space=vmem, size = 0x1000, scoped, tag = 'scratch operand']
  #allocation3 [shape = 'f32[1,1]{1,0:T(1,128)S(6)}', space=smem, size = 0x200, scoped, tag = 'scoped memory for tpu_custom_call.1']
  #allocation9 [shape = 's32[]', space=sflag, size = 0x4, offset = 0, fixed_abs, tag = 'sflag constant byte address 0x0 - dummy sync flag']
  %s0 = inlined_call_operand.hbm [shape: bf16[8,32,128], index: 0, kind: input, shape index: {}]
  %s1 = inlined_call_operand.hbm [shape: bf16[128,128], index: 1, kind: input, shape index: {}]
  %s2 = inlined_call_operand.vmem [shape: f32[1,128], index: 2, kind: input, shape index: {}]
  %s3 = inlined_call_operand.hbm [shape: bf16[128,128], index: 3, kind: input, shape index: {}]
  %s4 = inlined_call_operand.vmem [shape: f32[1,128], index: 4, kind: input, shape index: {}]
  %s5 = inlined_call_operand.vmem [shape: f32[1,128], index: 5, kind: input, shape index: {}]
  %s6 = inlined_call_operand.<no memory space> [shape: f32[1,1], index: 6, kind: input, shape index: {}]
  %s7 = inlined_call_operand.vmem [shape: f32[8,1], index: 7, kind: output, shape index: {}]
  %s8 = sld [smem:[#allocation0]]
  $region81: #{tpu_custom_call.1} parent=0
    _
  %s10 = ssub.s32 1, %s8
  %s11 = scalar_select 0, %s10, %s8
  %12 = sst [smem:[#allocation3]] %s6
  $region1: #{tpu_custom_call.1} parent=0
    #allocation4 [shape = 'u8[65536]{0}', space=vmem, size = 0x10000, scoped, tag = 'input window, operand 0']
    #allocation5 [shape = 's32[2]{0}', space=sflag, size = 0x8, scoped, tag = 'scoped memory for tpu_custom_call.1']
    #allocation6 [shape = 'u8[32768]{0}', space=vmem, size = 0x8000, scoped, tag = 'input window, operand 1, single buffered']
    #allocation7 [shape = 's32[1]{0}', space=sflag, size = 0x4, scoped, tag = 'scoped memory for tpu_custom_call.1']
    #allocation8 [shape = 'u8[32768]{0}', space=vmem, size = 0x8000, scoped, tag = 'input window, operand 3, single buffered']
    %13 = vsyncpa [#allocation5], 0
    %s14 = scalar_lea.sflag [#allocation5], 1
    %15 = vsyncpa %s14, 0
    %16 = vsyncpa [#allocation7], 0
    loop: start=0, step=1, limit=4
    $region2: #{tpu_custom_call.1} parent=1 // loop_pre_header
      _
    $region3: #{tpu_custom_call.1} parent=1 // loop_header
      %s18 = sphi 0, %s22
      %p19 = scmp.ge.s32.totalorder %s18, 4
      %s28 = sphi 0, %s30
      %s31 = sphi 0, %s28
      %s32 = sphi 0, %s31
      %s48 = sphi 0, %s32
      %s52 = sphi 0, %s52
      %s54 = sphi 0, %s52
      %s55 = sphi 0, %s54
      %s69 = sphi 0, %s55
      %s73 = sphi 0, %s73
      %s75 = sphi 0, %s73
      %s76 = sphi 0, %s75
      %s90 = sphi 0, %s76
      %s94 = sphi 0, %s94
      %s96 = sphi 0, %s94
      %s97 = sphi 0, %s96
      %s111 = sphi 0, %s97
      %s115 = sphi 0, %s115
      %s117 = sphi 0, %s115
      %s118 = sphi 0, %s117
      %s132 = sphi 0, %s118
      %s136 = sphi 0, %s136
      %s138 = sphi 0, %s136
      %s139 = sphi 0, %s138
      %s153 = sphi 0, %s139
      %s157 = sphi 0, %s157
      %s159 = sphi 0, %s157
      %s160 = sphi 0, %s159
      %s174 = sphi 0, %s160
      %s178 = sphi 0, %s178
      %s180 = sphi 0, %s178
      %s181 = sphi 0, %s180
      %s195 = sphi 0, %s181
    $region4: #{tpu_custom_call.1} parent=1 // loop_header_branch
      %21 = sbr.rel (%p19) target = $region8
    $region5: #{tpu_custom_call.1} parent=1 // loop_body
      %s23 = ssub.s32 %s18, 1
      %s24 = ssub.s32 %s18, 2
      %s25 = sadd.s32 %s18, 1
      %s26 = ssub.s32 %s18, %s25
      %p27 = scmp.eq.s32.totalorder %s26, 0
      %s29 = sadd.s32 %s28, 1
      %s30 = scalar_select %p27, %s28, %s29
      %p33 = pneg %p27
      %p34 = scmp.eq.s32.totalorder %s18, 1
      %p35 = por %p33, %p34
      %p36 = scmp.ne.s32.totalorder %s28, %s31
      %p37 = scmp.eq.s32.totalorder %s18, 0
      %p38 = por %p36, %p37
      %p39 = scmp.ne.s32.totalorder %s28, %s31
      %p40 = scmp.eq.s32.totalorder %s23, 1
      %p41 = por %p39, %p40
      %p42 = scmp.ne.s32.totalorder %s31, %s32
      %p43 = scmp.eq.s32.totalorder %s23, 0
      %p44 = por %p42, %p43
      %p45 = scmp.ne.s32.totalorder %s31, %s32
      %p46 = scmp.eq.s32.totalorder %s24, 1
      %p47 = por %p45, %p46
      %p49 = scmp.ne.s32.totalorder %s32, %s48
      %p50 = scmp.eq.s32.totalorder %s24, 0
      %p51 = por %p49, %p50
      %s53 = sadd.s32 %s52, 1
      %p56 = scmp.eq.s32.totalorder %s18, 1
      %p57 = scmp.ne.s32.totalorder %s52, %s54
      %p58 = scmp.eq.s32.totalorder %s18, 0
      %p59 = por %p57, %p58
      %p60 = scmp.ne.s32.totalorder %s52, %s54
      %p61 = scmp.eq.s32.totalorder %s23, 1
      %p62 = por %p60, %p61
      %p63 = scmp.ne.s32.totalorder %s54, %s55
      %p64 = scmp.eq.s32.totalorder %s23, 0
      %p65 = por %p63, %p64
      %p66 = scmp.ne.s32.totalorder %s54, %s55
      %p67 = scmp.eq.s32.totalorder %s24, 1
      %p68 = por %p66, %p67
      %p70 = scmp.ne.s32.totalorder %s55, %s69
      %p71 = scmp.eq.s32.totalorder %s24, 0
      %p72 = por %p70, %p71
      %s74 = sadd.s32 %s73, 1
      %p77 = scmp.eq.s32.totalorder %s18, 1
      %p78 = scmp.ne.s32.totalorder %s73, %s75
      %p79 = scmp.eq.s32.totalorder %s18, 0
      %p80 = por %p78, %p79
      %p81 = scmp.ne.s32.totalorder %s73, %s75
      %p82 = scmp.eq.s32.totalorder %s23, 1
      %p83 = por %p81, %p82
      %p84 = scmp.ne.s32.totalorder %s75, %s76
      %p85 = scmp.eq.s32.totalorder %s23, 0
      %p86 = por %p84, %p85
      %p87 = scmp.ne.s32.totalorder %s75, %s76
      %p88 = scmp.eq.s32.totalorder %s24, 1
      %p89 = por %p87, %p88
      %p91 = scmp.ne.s32.totalorder %s76, %s90
      %p92 = scmp.eq.s32.totalorder %s24, 0
      %p93 = por %p91, %p92
      %s95 = sadd.s32 %s94, 1
      %p98 = scmp.eq.s32.totalorder %s18, 1
      %p99 = scmp.ne.s32.totalorder %s94, %s96
      %p100 = scmp.eq.s32.totalorder %s18, 0
      %p101 = por %p99, %p100
      %p102 = scmp.ne.s32.totalorder %s94, %s96
      %p103 = scmp.eq.s32.totalorder %s23, 1
      %p104 = por %p102, %p103
      %p105 = scmp.ne.s32.totalorder %s96, %s97
      %p106 = scmp.eq.s32.totalorder %s23, 0
      %p107 = por %p105, %p106
      %p108 = scmp.ne.s32.totalorder %s96, %s97
      %p109 = scmp.eq.s32.totalorder %s24, 1
      %p110 = por %p108, %p109
      %p112 = scmp.ne.s32.totalorder %s97, %s111
      %p113 = scmp.eq.s32.totalorder %s24, 0
      %p114 = por %p112, %p113
      %s116 = sadd.s32 %s115, 1
      %p119 = scmp.eq.s32.totalorder %s18, 1
      %p120 = scmp.ne.s32.totalorder %s115, %s117
      %p121 = scmp.eq.s32.totalorder %s18, 0
      %p122 = por %p120, %p121
      %p123 = scmp.ne.s32.totalorder %s115, %s117
      %p124 = scmp.eq.s32.totalorder %s23, 1
      %p125 = por %p123, %p124
      %p126 = scmp.ne.s32.totalorder %s117, %s118
      %p127 = scmp.eq.s32.totalorder %s23, 0
      %p128 = por %p126, %p127
      %p129 = scmp.ne.s32.totalorder %s117, %s118
      %p130 = scmp.eq.s32.totalorder %s24, 1
      %p131 = por %p129, %p130
      %p133 = scmp.ne.s32.totalorder %s118, %s132
      %p134 = scmp.eq.s32.totalorder %s24, 0
      %p135 = por %p133, %p134
      %s137 = sadd.s32 %s136, 1
      %p140 = scmp.eq.s32.totalorder %s18, 1
      %p141 = scmp.ne.s32.totalorder %s136, %s138
      %p142 = scmp.eq.s32.totalorder %s18, 0
      %p143 = por %p141, %p142
      %p144 = scmp.ne.s32.totalorder %s136, %s138
      %p145 = scmp.eq.s32.totalorder %s23, 1
      %p146 = por %p144, %p145
      %p147 = scmp.ne.s32.totalorder %s138, %s139
      %p148 = scmp.eq.s32.totalorder %s23, 0
      %p149 = por %p147, %p148
      %p150 = scmp.ne.s32.totalorder %s138, %s139
      %p151 = scmp.eq.s32.totalorder %s24, 1
      %p152 = por %p150, %p151
      %p154 = scmp.ne.s32.totalorder %s139, %s153
      %p155 = scmp.eq.s32.totalorder %s24, 0
      %p156 = por %p154, %p155
      %s158 = sadd.s32 %s157, 1
      %p161 = scmp.eq.s32.totalorder %s18, 1
      %p162 = scmp.ne.s32.totalorder %s157, %s159
      %p163 = scmp.eq.s32.totalorder %s18, 0
      %p164 = por %p162, %p163
      %p165 = scmp.ne.s32.totalorder %s157, %s159
      %p166 = scmp.eq.s32.totalorder %s23, 1
      %p167 = por %p165, %p166
      %p168 = scmp.ne.s32.totalorder %s159, %s160
      %p169 = scmp.eq.s32.totalorder %s23, 0
      %p170 = por %p168, %p169
      %p171 = scmp.ne.s32.totalorder %s159, %s160
      %p172 = scmp.eq.s32.totalorder %s24, 1
      %p173 = por %p171, %p172
      %p175 = scmp.ne.s32.totalorder %s160, %s174
      %p176 = scmp.eq.s32.totalorder %s24, 0
      %p177 = por %p175, %p176
      %s179 = sadd.s32 %s178, 1
      %p182 = scmp.eq.s32.totalorder %s18, 1
      %p183 = scmp.ne.s32.totalorder %s178, %s180
      %p184 = scmp.eq.s32.totalorder %s18, 0
      %p185 = por %p183, %p184
      %p186 = scmp.ne.s32.totalorder %s178, %s180
      %p187 = scmp.eq.s32.totalorder %s23, 1
      %p188 = por %p186, %p187
      %p189 = scmp.ne.s32.totalorder %s180, %s181
      %p190 = scmp.eq.s32.totalorder %s23, 0
      %p191 = por %p189, %p190
      %p192 = scmp.ne.s32.totalorder %s180, %s181
      %p193 = scmp.eq.s32.totalorder %s24, 1
      %p194 = por %p192, %p193
      %p196 = scmp.ne.s32.totalorder %s181, %s195
      %p197 = scmp.eq.s32.totalorder %s24, 0
      %p198 = por %p196, %p197
      %p199 = scmp.le.s32.totalorder 1, %s18
      %p200 = scmp.lt.s32.totalorder %s18, 3
      %p201 = pnand %p199, %p200
      %p202 = pneg %p201
      // Predicated region
      $region9: #{tpu_custom_call.1} parent=5 // pred_check
        _
      $region10: #{tpu_custom_call.1} parent=5 // pred_check_branch
        %204 = sbr.rel (%p201) target = $region12
      $region11: #{tpu_custom_call.1} parent=5 // pred_region
        %s205 = ssub.s32 %s18, 1
        // Predicated region
        $region13: #{tpu_custom_call.1} parent=11 // pred_check
          %p206 = pneg %p65
        $region14: #{tpu_custom_call.1} parent=11 // pred_check_branch
          %208 = sbr.rel (%p206) target = $region16
        $region15: #{tpu_custom_call.1} parent=11 // pred_region
          %s210 = ssub.s32 1024, 1024
          %211 = vsyncadd [#allocation7], %s210
          %s212 = sshll.u32 [#allocation6], 4
          %s213 = int_to_ptr.vmem [resolvable:$true] %s212
          %218 = dma.hbm_to_vmem [thread:$0]  %s1, 1024, %s213, [#allocation7], 64, 64, 4
        $region16: #{tpu_custom_call.1} parent=11 // pred_fallthru
          _
        // Predicated region
        $region17: #{tpu_custom_call.1} parent=11 // pred_check
          %p219 = pneg %p86
        $region18: #{tpu_custom_call.1} parent=11 // pred_check_branch
          %221 = sbr.rel (%p219) target = $region20
        $region19: #{tpu_custom_call.1} parent=11 // pred_region
          _
        $region20: #{tpu_custom_call.1} parent=11 // pred_fallthru
          _
        // Predicated region
        $region21: #{tpu_custom_call.1} parent=11 // pred_check
          %p222 = pneg %p107
        $region22: #{tpu_custom_call.1} parent=11 // pred_check_branch
          %224 = sbr.rel (%p222) target = $region24
        $region23: #{tpu_custom_call.1} parent=11 // pred_region
          %s226 = ssub.s32 1024, 1024
          %227 = vsyncadd [#allocation7], %s226
          %s228 = sshll.u32 [#allocation8], 4
          %s229 = int_to_ptr.vmem [resolvable:$true] %s228
          %234 = dma.hbm_to_vmem [thread:$0]  %s3, 1024, %s229, [#allocation7], 64, 64, 4
        $region24: #{tpu_custom_call.1} parent=11 // pred_fallthru
          _
        // Predicated region
        $region25: #{tpu_custom_call.1} parent=11 // pred_check
          %p235 = pneg %p128
        $region26: #{tpu_custom_call.1} parent=11 // pred_check_branch
          %237 = sbr.rel (%p235) target = $region28
        $region27: #{tpu_custom_call.1} parent=11 // pred_region
          _
        $region28: #{tpu_custom_call.1} parent=11 // pred_fallthru
          _
        // Predicated region
        $region29: #{tpu_custom_call.1} parent=11 // pred_check
          %p238 = pneg %p149
        $region30: #{tpu_custom_call.1} parent=11 // pred_check_branch
          %240 = sbr.rel (%p238) target = $region32
        $region31: #{tpu_custom_call.1} parent=11 // pred_region
          _
        $region32: #{tpu_custom_call.1} parent=11 // pred_fallthru
          _
        // Predicated region
        $region33: #{tpu_custom_call.1} parent=11 // pred_check
          %p241 = pneg %p170
        $region34: #{tpu_custom_call.1} parent=11 // pred_check_branch
          %243 = sbr.rel (%p241) target = $region36
        $region35: #{tpu_custom_call.1} parent=11 // pred_region
          _
        $region36: #{tpu_custom_call.1} parent=11 // pred_fallthru
          _
      $region12: #{tpu_custom_call.1} parent=5 // pred_fallthru
        _
      %p244 = scmp.lt.s32.totalorder %s18, 2
      // Predicated region
      $region37: #{tpu_custom_call.1} parent=5 // pred_check
        %p245 = pneg %p244
      $region38: #{tpu_custom_call.1} parent=5 // pred_check_branch
        %247 = sbr.rel (%p245) target = $region40
      $region39: #{tpu_custom_call.1} parent=5 // pred_region
        // Predicated region
        $region41: #{tpu_custom_call.1} parent=39 // pred_check
          %p248 = pneg %p38
        $region42: #{tpu_custom_call.1} parent=39 // pred_check_branch
          %250 = sbr.rel (%p248) target = $region44
        $region43: #{tpu_custom_call.1} parent=39 // pred_region
          #allocation10 [shape = 'u32[6]{0}', space=smem, size = 0x18, scoped, tag = 'DMA stride descriptor']
          %s251 = sand.u32 %s28, 1
          %s252 = scalar_lea.sflag [#allocation5], %s251
          %s253 = sand.u32 %s28, 1
          %s254 = smul.addr %s253, 64
          %s255 = scalar_lea.vmem [#allocation4], %s254
          %s256 = smul.u32 2, %s18
          %s258 = ssub.s32 1024, 1024
          %259 = vsyncadd %s252, %s258
          %s260 = smul.addr %s256, 64
          %s261 = scalar_lea.hbm %s0, %s260
          %s263 = sshll.u32 1, 14
          %s264 = sxor.u32 4294967295, %s263
          %s266 = sld [smem:[#allocation0]]
          %s267 = sadd.s32 2, %s266
          %s269 = sshll.u32 7, 26
          %s270 = sxor.u32 4294967295, %s269
          %s271 = sand.u32 0, %s270
          %s272 = sshll.u32 %s267, 26
          %s273 = sor.u32 %s271, %s272
          %s274 = sshll.u32 %s255, 4
          %s275 = int_to_ptr.vmem [resolvable:$true] %s274
          %281 = sst [smem:[#allocation10]] 256
          %s282 = scalar_lea.smem [#allocation10], 1
          %283 = sst [smem:[%s282]] 128
          %s284 = scalar_lea.smem [#allocation10], 2
          %285 = sst [smem:[%s284]] 2
          %s286 = scalar_lea.smem [#allocation10], 3
          %287 = sst [smem:[%s286]] 64
          %s288 = scalar_lea.smem [#allocation10], 4
          %289 = sst [smem:[%s288]] 64
          %s290 = scalar_lea.smem [#allocation10], 5
          %291 = sst [smem:[%s290]] 4
          %293 = dma.general %s261, 1024, %s275, %s252, 131072, [#allocation10], %s273, 0
        $region44: #{tpu_custom_call.1} parent=39 // pred_fallthru
          _
      $region40: #{tpu_custom_call.1} parent=5 // pred_fallthru
        _
      %p294 = scmp.le.s32.totalorder 1, %s18
      %p295 = scmp.lt.s32.totalorder %s18, 3
      %p296 = pnand %p294, %p295
      %p297 = pneg %p296
      // Predicated region
      $region45: #{tpu_custom_call.1} parent=5 // pred_check
        _
      $region46: #{tpu_custom_call.1} parent=5 // pred_check_branch
        %299 = sbr.rel (%p296) target = $region48
      $region47: #{tpu_custom_call.1} parent=5 // pred_region
        %s300 = ssub.s32 %s18, 1
        %s301 = sand.u32 %s31, 1
        %s302 = scalar_lea.sflag [#allocation5], %s301
        %s303 = sand.u32 %s31, 1
        %s304 = smul.addr %s303, 64
        %s305 = scalar_lea.vmem [#allocation4], %s304
        // Predicated region
        $region49: #{tpu_custom_call.1} parent=47 // pred_check
          %p306 = pneg %p44
        $region50: #{tpu_custom_call.1} parent=47 // pred_check_branch
          %308 = sbr.rel (%p306) target = $region52
        $region51: #{tpu_custom_call.1} parent=47 // pred_region
          %309 = dma.done %s302, 1024
        $region52: #{tpu_custom_call.1} parent=47 // pred_fallthru
          _
        // Predicated region
        $region53: #{tpu_custom_call.1} parent=47 // pred_check
          %p310 = pneg %p65
        $region54: #{tpu_custom_call.1} parent=47 // pred_check_branch
          %312 = sbr.rel (%p310) target = $region56
        $region55: #{tpu_custom_call.1} parent=47 // pred_region
          %313 = dma.done [#allocation7], 1024
        $region56: #{tpu_custom_call.1} parent=47 // pred_fallthru
          _
        // Predicated region
        $region57: #{tpu_custom_call.1} parent=47 // pred_check
          %p314 = pneg %p107
        $region58: #{tpu_custom_call.1} parent=47 // pred_check_branch
          %316 = sbr.rel (%p314) target = $region60
        $region59: #{tpu_custom_call.1} parent=47 // pred_region
          %317 = dma.done [#allocation7], 1024
        $region60: #{tpu_custom_call.1} parent=47 // pred_fallthru
          _
        %s318 = sand.u32 %s31, 1
        %s319 = scalar_lea.sflag [#allocation5], %s318
        %s320 = sand.u32 %s31, 1
        %s321 = smul.addr %s320, 64
        %s322 = scalar_lea.vmem [#allocation4], %s321
        %p323 = pneg %p44
        %p324 = pneg %p41
        %p325 = pneg %p65
        %p326 = pneg %p62
        %p327 = pneg %p86
        %p328 = pneg %p83
        %p329 = pneg %p107
        %p330 = pneg %p104
        %p331 = pneg %p128
        %p332 = pneg %p125
        %p333 = pneg %p149
        %p334 = pneg %p146
        %p335 = pneg %p170
        %p336 = pneg %p167
        %p337 = pneg %p191
        %p338 = pneg %p188
        %s339 = smul.u32 2, %s23
        %p341 = scmp.eq.s32.totalorder %s23, 0
        // Predicated region
        $region61: #{tpu_custom_call.1} parent=47 // pred_check
          %p342 = pneg %p341
        $region62: #{tpu_custom_call.1} parent=47 // pred_check_branch
          %344 = sbr.rel (%p342) target = $region64
        $region63: #{tpu_custom_call.1} parent=47 // pred_region
          %345 = vst [vmem:[#allocation2] sm:$0xff] 0.0
        $region64: #{tpu_custom_call.1} parent=47 // pred_fallthru
          _
        %v346 = vld [vmem:[#allocation2] sm:$0xff]
        %v347 = vld [vmem:[%s305] sm:$0xf]
        %v348 = vld [vmem:[%s305 + $0x4] sm:$0xf]
        %v349 = vld [vmem:[%s305 + $0x8] sm:$0xf]
        %v350 = vld [vmem:[%s305 + $0xc] sm:$0xf]
        %v351 = vld [vmem:[%s305 + $0x10] sm:$0xf]
        %v352 = vld [vmem:[%s305 + $0x14] sm:$0xf]
        %v353 = vld [vmem:[%s305 + $0x18] sm:$0xf]
        %v354 = vld [vmem:[%s305 + $0x1c] sm:$0xf]
        %v355 = vld [vmem:[%s305 + $0x20] sm:$0xf]
        %v356 = vld [vmem:[%s305 + $0x24] sm:$0xf]
        %v357 = vld [vmem:[%s305 + $0x28] sm:$0xf]
        %v358 = vld [vmem:[%s305 + $0x2c] sm:$0xf]
        %v359 = vld [vmem:[%s305 + $0x30] sm:$0xf]
        %v360 = vld [vmem:[%s305 + $0x34] sm:$0xf]
        %v361 = vld [vmem:[%s305 + $0x38] sm:$0xf]
        %v362 = vld [vmem:[%s305 + $0x3c] sm:$0xf]
        %v363 = vunpack.c.l.bf16 %v347
        %v364 = vunpack.c.l.bf16 %v348
        %v365 = vunpack.c.l.bf16 %v349
        %v366 = vunpack.c.l.bf16 %v350
        %v367 = vunpack.c.l.bf16 %v351
        %v368 = vunpack.c.l.bf16 %v352
        %v369 = vunpack.c.l.bf16 %v353
        %v370 = vunpack.c.l.bf16 %v354
        %v371 = vunpack.c.l.bf16 %v355
        %v372 = vunpack.c.l.bf16 %v356
        %v373 = vunpack.c.l.bf16 %v357
        %v374 = vunpack.c.l.bf16 %v358
        %v375 = vunpack.c.l.bf16 %v359
        %v376 = vunpack.c.l.bf16 %v360
        %v377 = vunpack.c.l.bf16 %v361
        %v378 = vunpack.c.l.bf16 %v362
        %v379 = vadd.f32 %v363, %v364
        %v380 = vrot.slane %v379, 4
        %v381 = vadd.f32 %v379, %v380
        %v382 = vrot.slane %v381, 2
        %v383 = vadd.f32 %v381, %v382
        %v384 = vrot.slane %v383, 1
        %v385 = vadd.f32 %v383, %v384
        %v386 = vadd.f32 %v365, %v366
        %v387 = vrot.slane %v386, 4
        %v388 = vadd.f32 %v386, %v387
        %v389 = vrot.slane %v388, 2
        %v390 = vadd.f32 %v388, %v389
        %v391 = vrot.slane %v390, 1
        %v392 = vadd.f32 %v390, %v391
        %v393 = vadd.f32 %v367, %v368
        %v394 = vrot.slane %v393, 4
        %v395 = vadd.f32 %v393, %v394
        %v396 = vrot.slane %v395, 2
        %v397 = vadd.f32 %v395, %v396
        %v398 = vrot.slane %v397, 1
        %v399 = vadd.f32 %v397, %v398
        %v400 = vadd.f32 %v369, %v370
        %v401 = vrot.slane %v400, 4
        %v402 = vadd.f32 %v400, %v401
        %v403 = vrot.slane %v402, 2
        %v404 = vadd.f32 %v402, %v403
        %v405 = vrot.slane %v404, 1
        %v406 = vadd.f32 %v404, %v405
        %v407 = vadd.f32 %v371, %v372
        %v408 = vrot.slane %v407, 4
        %v409 = vadd.f32 %v407, %v408
        %v410 = vrot.slane %v409, 2
        %v411 = vadd.f32 %v409, %v410
        %v412 = vrot.slane %v411, 1
        %v413 = vadd.f32 %v411, %v412
        %v414 = vadd.f32 %v373, %v374
        %v415 = vrot.slane %v414, 4
        %v416 = vadd.f32 %v414, %v415
        %v417 = vrot.slane %v416, 2
        %v418 = vadd.f32 %v416, %v417
        %v419 = vrot.slane %v418, 1
        %v420 = vadd.f32 %v418, %v419
        %v421 = vadd.f32 %v375, %v376
        %v422 = vrot.slane %v421, 4
        %v423 = vadd.f32 %v421, %v422
        %v424 = vrot.slane %v423, 2
        %v425 = vadd.f32 %v423, %v424
        %v426 = vrot.slane %v425, 1
        %v427 = vadd.f32 %v425, %v426
        %v428 = vadd.f32 %v377, %v378
        %v429 = vrot.slane %v428, 4
        %v430 = vadd.f32 %v428, %v429
        %v431 = vrot.slane %v430, 2
        %v432 = vadd.f32 %v430, %v431
        %v433 = vrot.slane %v432, 1
        %v434 = vadd.f32 %v432, %v433
        %vm443 = vcmask 1041409
        %v444 = vsel %vm443, %v392, %v385
        %vm445 = vcmask 1042434
        %v446 = vsel %vm445, %v399, %v444
        %vm447 = vcmask 1043459
        %v448 = vsel %vm447, %v406, %v446
        %vm449 = vcmask 1044484
        %v450 = vsel %vm449, %v413, %v448
        %vm451 = vcmask 1045509
        %v452 = vsel %vm451, %v420, %v450
        %vm453 = vcmask 1046534
        %v454 = vsel %vm453, %v427, %v452
        %vm455 = vcmask 1047559
        %v456 = vsel %vm455, %v434, %v454
        %v458 = vadd.f32 %v346, %v456
        %459 = vst [vmem:[#allocation2] sm:$0xff] %v458
        %p460 = scmp.eq.s32.totalorder %s23, 1
        // Predicated region
        $region65: #{tpu_custom_call.1} parent=47 // pred_check
          %p461 = pneg %p460
        $region66: #{tpu_custom_call.1} parent=47 // pred_check_branch
          %463 = sbr.rel (%p461) target = $region68
        $region67: #{tpu_custom_call.1} parent=47 // pred_region
          %v464 = vld [vmem:[#allocation2] sm:$0xff]
          %v465 = vmul.f32 %v464, 0.03125
          %v466 = vpack.c.bf16 %v465, %v465
          %v467 = vld [vmem:[#allocation6] sm:$0xf]
          %v468 = vld [vmem:[#allocation6 + $0x4] sm:$0xf]
          %v469 = vld [vmem:[#allocation6 + $0x8] sm:$0xf]
          %v470 = vld [vmem:[#allocation6 + $0xc] sm:$0xf]
          %v471 = vld [vmem:[#allocation6 + $0x10] sm:$0xf]
          %v472 = vld [vmem:[#allocation6 + $0x14] sm:$0xf]
          %v473 = vld [vmem:[#allocation6 + $0x18] sm:$0xf]
          %v474 = vld [vmem:[#allocation6 + $0x1c] sm:$0xf]
          %v475 = vld [vmem:[#allocation6 + $0x20] sm:$0xf]
          %v476 = vld [vmem:[#allocation6 + $0x24] sm:$0xf]
          %v477 = vld [vmem:[#allocation6 + $0x28] sm:$0xf]
          %v478 = vld [vmem:[#allocation6 + $0x2c] sm:$0xf]
          %v479 = vld [vmem:[#allocation6 + $0x30] sm:$0xf]
          %v480 = vld [vmem:[#allocation6 + $0x34] sm:$0xf]
          %v481 = vld [vmem:[#allocation6 + $0x38] sm:$0xf]
          %v482 = vld [vmem:[#allocation6 + $0x3c] sm:$0xf]
          %v483 = vld [vmem:[%s2] sm:$0x1]
          %v485 = vlaneseq
          %v486 = vshrl.u32 %v485, 7
          %v487 = vsub.s32 0, %v486
          %v488 = vrot.slane %v483, %v487
          %v506 = vunpack.c.l.b16 %v467
          %v507 = vunpack.c.l.b16 %v468
          %v508 = vunpack.c.l.b16 %v469
          %v509 = vunpack.c.l.b16 %v470
          %v510 = vunpack.c.l.b16 %v471
          %v511 = vunpack.c.l.b16 %v472
          %v512 = vunpack.c.l.b16 %v473
          %v513 = vunpack.c.l.b16 %v474
          %v514 = vunpack.c.l.b16 %v475
          %v515 = vunpack.c.l.b16 %v476
          %v516 = vunpack.c.l.b16 %v477
          %v517 = vunpack.c.l.b16 %v478
          %v518 = vunpack.c.l.b16 %v479
          %v519 = vunpack.c.l.b16 %v480
          %v520 = vunpack.c.l.b16 %v481
          %v521 = vunpack.c.l.b16 %v482
          %v522 = vpack.c.b16 %v507, %v506
          %v523 = vpack.c.b16 %v509, %v508
          %v524 = vpack.c.b16 %v511, %v510
          %v525 = vpack.c.b16 %v513, %v512
          %v526 = vpack.c.b16 %v515, %v514
          %v527 = vpack.c.b16 %v517, %v516
          %v528 = vpack.c.b16 %v519, %v518
          %v529 = vpack.c.b16 %v521, %v520
          %538 = vmatprep.subr.bf16.mxu0 0
          %539 = vmatpush1.bf16.msra.mxu0 %v529
          %540 = vmatprep.subr.bf16.mxu0 0
          %541 = vmatpush1.bf16.msra.mxu0 %v528
          %542 = vmatprep.subr.bf16.mxu0 0
          %543 = vmatpush1.bf16.msra.mxu0 %v527
          %544 = vmatprep.subr.bf16.mxu0 0
          %545 = vmatpush1.bf16.msra.mxu0 %v526
          %546 = vmatprep.subr.bf16.mxu0 0
          %547 = vmatpush1.bf16.msra.mxu0 %v525
          %548 = vmatprep.subr.bf16.mxu0 0
          %549 = vmatpush1.bf16.msra.mxu0 %v524
          %550 = vmatprep.subr.bf16.mxu0 0
          %551 = vmatpush1.bf16.msra.mxu0 %v523
          %552 = vmatprep.subr.bf16.mxu0 0
          %553 = vmatpush1.bf16.msra.mxu0 %v522
          %554 = vmatprep.subr.bf16.mxu0 0
          %555 = vmatpush2.bf16.msra.mxu0 0
          %556 = vmatprep.subr.bf16.mxu0 0
          %557 = vmatpush2.bf16.msra.mxu0 0
          %558 = vmatprep.subr.bf16.mxu0 0
          %559 = vmatpush2.bf16.msra.mxu0 0
          %560 = vmatprep.subr.bf16.mxu0 0
          %561 = vmatpush2.bf16.msra.mxu0 0
          %562 = vmatprep.subr.bf16.mxu0 0
          %563 = vmatpush2.bf16.msra.mxu0 0
          %564 = vmatprep.subr.bf16.mxu0 0
          %565 = vmatpush2.bf16.msra.mxu0 0
          %566 = vmatprep.subr.bf16.mxu0 0
          %567 = vmatpush2.bf16.msra.mxu0 0
          %568 = vmatprep.subr.bf16.mxu0 0
          %569 = vmatpush2.bf16.msra.mxu0 0
          %570 = vmatprep.mubr.bf16.mxu0 0
          %571 = vmatmul.mubr.bf16.gmra.mxu0 %v466
          %v572 = vpop.f32.mrf.mxu0
          %v573 = vadd.f32 %v488, %v572
          %v574 = vpop.f32.mrf.mxu0
          %v575 = vpop.f32.mrf.mxu0
          %v576 = vpop.f32.mrf.mxu0
          %577 = vdwg.mxu0
          %v578 = vmax.f32 %v573, 0.0
          %v579 = vpack.c.bf16 %v578, %v578
          %v580 = vld [vmem:[#allocation8] sm:$0xf]
          %v581 = vld [vmem:[#allocation8 + $0x4] sm:$0xf]
          %v582 = vld [vmem:[#allocation8 + $0x8] sm:$0xf]
          %v583 = vld [vmem:[#allocation8 + $0xc] sm:$0xf]
          %v584 = vld [vmem:[#allocation8 + $0x10] sm:$0xf]
          %v585 = vld [vmem:[#allocation8 + $0x14] sm:$0xf]
          %v586 = vld [vmem:[#allocation8 + $0x18] sm:$0xf]
          %v587 = vld [vmem:[#allocation8 + $0x1c] sm:$0xf]
          %v588 = vld [vmem:[#allocation8 + $0x20] sm:$0xf]
          %v589 = vld [vmem:[#allocation8 + $0x24] sm:$0xf]
          %v590 = vld [vmem:[#allocation8 + $0x28] sm:$0xf]
          %v591 = vld [vmem:[#allocation8 + $0x2c] sm:$0xf]
          %v592 = vld [vmem:[#allocation8 + $0x30] sm:$0xf]
          %v593 = vld [vmem:[#allocation8 + $0x34] sm:$0xf]
          %v594 = vld [vmem:[#allocation8 + $0x38] sm:$0xf]
          %v595 = vld [vmem:[#allocation8 + $0x3c] sm:$0xf]
          %v596 = vld [vmem:[%s4] sm:$0x1]
          %v598 = vlaneseq
          %v599 = vshrl.u32 %v598, 7
          %v600 = vsub.s32 0, %v599
          %v601 = vrot.slane %v596, %v600
          %v619 = vunpack.c.l.b16 %v580
          %v620 = vunpack.c.l.b16 %v581
          %v621 = vunpack.c.l.b16 %v582
          %v622 = vunpack.c.l.b16 %v583
          %v623 = vunpack.c.l.b16 %v584
          %v624 = vunpack.c.l.b16 %v585
          %v625 = vunpack.c.l.b16 %v586
          %v626 = vunpack.c.l.b16 %v587
          %v627 = vunpack.c.l.b16 %v588
          %v628 = vunpack.c.l.b16 %v589
          %v629 = vunpack.c.l.b16 %v590
          %v630 = vunpack.c.l.b16 %v591
          %v631 = vunpack.c.l.b16 %v592
          %v632 = vunpack.c.l.b16 %v593
          %v633 = vunpack.c.l.b16 %v594
          %v634 = vunpack.c.l.b16 %v595
          %v635 = vpack.c.b16 %v620, %v619
          %v636 = vpack.c.b16 %v622, %v621
          %v637 = vpack.c.b16 %v624, %v623
          %v638 = vpack.c.b16 %v626, %v625
          %v639 = vpack.c.b16 %v628, %v627
          %v640 = vpack.c.b16 %v630, %v629
          %v641 = vpack.c.b16 %v632, %v631
          %v642 = vpack.c.b16 %v634, %v633
          %651 = vmatprep.subr.bf16.mxu0 0
          %652 = vmatpush1.bf16.msra.mxu0 %v642
          %653 = vmatprep.subr.bf16.mxu0 0
          %654 = vmatpush1.bf16.msra.mxu0 %v641
          %655 = vmatprep.subr.bf16.mxu0 0
          %656 = vmatpush1.bf16.msra.mxu0 %v640
          %657 = vmatprep.subr.bf16.mxu0 0
          %658 = vmatpush1.bf16.msra.mxu0 %v639
          %659 = vmatprep.subr.bf16.mxu0 0
          %660 = vmatpush1.bf16.msra.mxu0 %v638
          %661 = vmatprep.subr.bf16.mxu0 0
          %662 = vmatpush1.bf16.msra.mxu0 %v637
          %663 = vmatprep.subr.bf16.mxu0 0
          %664 = vmatpush1.bf16.msra.mxu0 %v636
          %665 = vmatprep.subr.bf16.mxu0 0
          %666 = vmatpush1.bf16.msra.mxu0 %v635
          %667 = vmatprep.subr.bf16.mxu0 0
          %668 = vmatpush2.bf16.msra.mxu0 0
          %669 = vmatprep.subr.bf16.mxu0 0
          %670 = vmatpush2.bf16.msra.mxu0 0
          %671 = vmatprep.subr.bf16.mxu0 0
          %672 = vmatpush2.bf16.msra.mxu0 0
          %673 = vmatprep.subr.bf16.mxu0 0
          %674 = vmatpush2.bf16.msra.mxu0 0
          %675 = vmatprep.subr.bf16.mxu0 0
          %676 = vmatpush2.bf16.msra.mxu0 0
          %677 = vmatprep.subr.bf16.mxu0 0
          %678 = vmatpush2.bf16.msra.mxu0 0
          %679 = vmatprep.subr.bf16.mxu0 0
          %680 = vmatpush2.bf16.msra.mxu0 0
          %681 = vmatprep.subr.bf16.mxu0 0
          %682 = vmatpush2.bf16.msra.mxu0 0
          %683 = vmatprep.mubr.bf16.mxu0 0
          %684 = vmatmul.mubr.bf16.gmra.mxu0 %v579
          %v685 = vpop.f32.mrf.mxu0
          %v686 = vadd.f32 %v601, %v685
          %v687 = vpop.f32.mrf.mxu0
          %v688 = vpop.f32.mrf.mxu0
          %v689 = vpop.f32.mrf.mxu0
          %690 = vdwg.mxu0
          %v691 = vmax.f32 %v686, 0.0
          %v692 = vld [vmem:[%s5] sm:$0x1]
          %v694 = vlaneseq
          %v695 = vshrl.u32 %v694, 7
          %v696 = vsub.s32 0, %v695
          %v697 = vrot.slane %v692, %v696
          %v699 = vmul.f32 %v691, %v697
          %700 = vadd.xlane.f32.xlu0 %v699
          %v701 = vpop.xlane.xlu0 %700
          %s702 = sld [smem:[#allocation3]]
          %v703 = vstv %s702
          %v704 = vadd.f32 %v701, %v703
          %v705 = vrot.slane %v704, 4
          %v706 = vmax.f32 %v704, %v705
          %v707 = vrot.slane %v706, 2
          %v708 = vmax.f32 %v706, %v707
          %v709 = vrot.slane %v708, 1
          %v710 = vmax.f32 %v708, %v709
          %v711 = vsub.f32 %v704, %v710
          %v712 = vmul.f32 %v711, 1.442695
          %v713 = vpow.pop %v712
          %v714 = vrot.slane %v713, 4
          %v715 = vadd.f32 %v713, %v714
          %v716 = vrot.slane %v715, 2
          %v717 = vadd.f32 %v715, %v716
          %v718 = vrot.slane %v717, 1
          %v719 = vadd.f32 %v717, %v718
          %v720 = vrcp.pop %v719
          %v721 = vmul.f32 %v713, %v720
          %vm722 = vcmask 7168
          %723 = vst.msk [vmem:[%s7] sm:$0xff] %vm722, %v721
        $region68: #{tpu_custom_call.1} parent=47 // pred_fallthru
          _
        // Predicated region
        $region69: #{tpu_custom_call.1} parent=47 // pred_check
          %p724 = pneg %p188
        $region70: #{tpu_custom_call.1} parent=47 // pred_check_branch
          %726 = sbr.rel (%p724) target = $region72
        $region71: #{tpu_custom_call.1} parent=47 // pred_region
          _
        $region72: #{tpu_custom_call.1} parent=47 // pred_fallthru
          _
        // Predicated region
        $region73: #{tpu_custom_call.1} parent=47 // pred_check
          %p727 = pneg %p188
        $region74: #{tpu_custom_call.1} parent=47 // pred_check_branch
          %729 = sbr.rel (%p727) target = $region76
        $region75: #{tpu_custom_call.1} parent=47 // pred_region
          _
        $region76: #{tpu_custom_call.1} parent=47 // pred_fallthru
          _
      $region48: #{tpu_custom_call.1} parent=5 // pred_fallthru
        _
      %p730 = scmp.le.s32.totalorder 2, %s18
      // Predicated region
      $region77: #{tpu_custom_call.1} parent=5 // pred_check
        %p731 = pneg %p730
      $region78: #{tpu_custom_call.1} parent=5 // pred_check_branch
        %733 = sbr.rel (%p731) target = $region80
      $region79: #{tpu_custom_call.1} parent=5 // pred_region
        %s734 = ssub.s32 %s18, 2
      $region80: #{tpu_custom_call.1} parent=5 // pred_fallthru
        _
    $region6: #{tpu_custom_call.1} parent=1 // loop_footer
      %s22 = sadd.s32 1, %s18
    $region7: #{tpu_custom_call.1} parent=1 // loop_footer_branch
      %17 = sbr.rel target = $region3
    $region8: #{tpu_custom_call.1} parent=1 // loop_exit
      _
    %735 = vsyncpa [#allocation5], 1
    %s736 = scalar_lea.sflag [#allocation5], 1
    %737 = vsyncpa %s736, 1
    %738 = vsyncpa [#allocation7], 1

</llo_original>
